<compile_context>
chip_gen: v6e
topology: v6e:2x2x1
jax: 0.10.0
libtpu: 0.0.40
codegen_flags: <defaults>
</compile_context>

<pallas_src>
import jax
import jax.numpy as jnp
from jax.experimental import pallas as pl
from jax.experimental.pallas import tpu as pltpu


def _round_up(x, m):
    return ((x + m - 1) // m) * m


def _vmem_capacity_bytes():
    """Physical VMEM per TensorCore (used only for tile-size heuristics)."""
    try:
        info = pltpu.get_tpu_info()
        cap = getattr(info, "vmem_capacity_bytes", None)
        if cap:
            return int(cap)
    except Exception:
        pass
    return 64 * 1024 * 1024  # conservative default (v7x per-core VMEM)


def _make_cls_head_kernel(inv_s):
    """inv_s = 1 / (T*H*W), baked in as a trace-time constant."""

    def kernel(x_ref, w_ref, b_ref, o_ref, acc_ref):
        # x_ref: (nb, c_blk, S) native layout, S on the lane axis
        # w_ref: (c_blk, Kp)    b_ref: (1, Kp)
        # o_ref: (nb, Kp)       acc_ref: (nb, Kp) f32 logits accumulator
        c = pl.program_id(1)

        @pl.when(c == 0)
        def _init():
            acc_ref[...] = jnp.zeros_like(acc_ref)

        # Sum this channel chunk over the pooled (lane) axis, widening to f32
        # during the reduction (XLU reduce; hidden under the DMA stream).
        chunk_sum = jnp.sum(x_ref[...], axis=-1, dtype=jnp.float32)  # (nb, c_blk)
        # Fold its contribution into the logits accumulator (MXU, native W dtype).
        acc_ref[...] += jnp.dot(chunk_sum.astype(w_ref.dtype), w_ref[...],
                                preferred_element_type=jnp.float32)

        @pl.when(c == pl.num_programs(1) - 1)
        def _finalize():
            # logits = (sum_x @ W) * (1/S) + b   (mean folded in after the dot)
            o_ref[...] = (acc_ref[...] * inv_s
                          + b_ref[...].astype(jnp.float32)).astype(o_ref.dtype)

    return kernel


def cls_head_forward(x, weight, bias, *, in_channels, temporal_feature_size,
                     spatial_feature_size, with_avg_pool=True,
                     target_block_bytes=None, batch_block_cap=64):
    """Mirrors ClsHead.forward (eval mode).

    x: (N, C, T, H, W) float array, or (N, C, H, W) which gets unsqueezed.
    weight: (num_classes, in_channels)   bias: (num_classes,)
    """
    if x.ndim == 4:
        x = x[:, :, None, :, :]
    N, C, T, H, W = x.shape
    assert C == in_channels
    assert T == temporal_feature_size
    assert H == spatial_feature_size
    assert W == spatial_feature_size
    assert with_avg_pool, "kernel assumes with_avg_pool=True (pool over full volume)"

    num_classes = weight.shape[0]
    assert weight.shape == (num_classes, in_channels)
    S = T * H * W
    Kp = _round_up(num_classes, 128)          # lane-dense output / matmul N dim

    itemsize = jnp.dtype(x.dtype).itemsize
    vmem_cap = _vmem_capacity_bytes()
    if target_block_bytes is None:
        # ~8 MiB x blocks where there is 128 MiB physical VMEM (v5e/v6e),
        # ~4 MiB on 64 MiB parts (v7x).
        target_block_bytes = (8 << 20) if vmem_cap >= (96 << 20) else (4 << 20)

    # ---- batch tile ---------------------------------------------------------
    # The leading block dim has no (8,128) constraint; the OUTPUT block's
    # second-to-last dim must be a multiple of 8 or equal the full batch extent.
    nb = N if N <= batch_block_cap else batch_block_cap   # cap is a multiple of 8

    def padded_block_bytes(nb_, c_):
        # Conservative VMEM footprint of one x block after (8,128) tile padding.
        return nb_ * _round_up(c_, 8) * _round_up(S, 128) * itemsize

    # ---- channel chunk (innermost reduction axis) ---------------------------
    c_blk = C
    if padded_block_bytes(nb, C) > target_block_bytes and C % 8 == 0:
        divisors = [d for d in range(8, C + 1, 8) if C % d == 0]
        fitting = [d for d in divisors
                   if padded_block_bytes(nb, d) <= target_block_bytes]
        c_blk = max(fitting) if fitting else min(divisors)
    # If even the smallest channel chunk is too big, shrink the batch tile,
    # keeping it a multiple of 8 so the output block stays legal.
    while (padded_block_bytes(nb, c_blk) > target_block_bytes
           and nb >= 16 and nb % 16 == 0):
        nb //= 2

    n_c = C // c_blk
    grid = (pl.cdiv(N, nb), n_c)

    # ---- small parameter re-layout (weight stays in native dtype) -----------
    x_ncs = x.reshape(N, C, S)                                    # free view
    w_t = weight.T                                                # (C, K), native dtype
    if Kp != num_classes:
        w_t = jnp.pad(w_t, ((0, 0), (0, Kp - num_classes)))
    b2d = bias.astype(jnp.float32).reshape(1, num_classes)
    if Kp != num_classes:
        b2d = jnp.pad(b2d, ((0, 0), (0, Kp - num_classes)))

    # ---- derived VMEM budget -------------------------------------------------
    w_itemsize = jnp.dtype(w_t.dtype).itemsize
    x_block = padded_block_bytes(nb, c_blk)
    w_block = _round_up(c_blk, 8) * Kp * w_itemsize
    b_block = 8 * Kp * 4
    o_block = _round_up(nb, 8) * Kp * itemsize
    acc_block = _round_up(nb, 8) * Kp * 4
    derived = 2 * x_block + 2 * w_block + 2 * b_block + 2 * o_block + acc_block
    vmem_limit = max(derived + (2 << 20), 16 << 20)
    vmem_limit = min(vmem_limit, vmem_cap)

    cost = pl.CostEstimate(
        flops=int(N * C * S + 2 * N * C * num_classes),
        transcendentals=0,
        bytes_accessed=int(x_ncs.size * itemsize + w_t.size * w_itemsize
                           + b2d.size * 4 + N * Kp * itemsize),
    )

    out = pl.pallas_call(
        _make_cls_head_kernel(1.0 / float(S)),
        out_shape=jax.ShapeDtypeStruct((N, Kp), x.dtype),
        grid_spec=pltpu.PrefetchScalarGridSpec(
            num_scalar_prefetch=0,
            grid=grid,
            in_specs=[
                pl.BlockSpec((nb, c_blk, S), lambda n, c: (n, c, 0)),  # x (native)
                pl.BlockSpec((c_blk, Kp), lambda n, c: (c, 0)),        # W chunk
                pl.BlockSpec((1, Kp), lambda n, c: (0, 0)),            # bias (resident)
            ],
            out_specs=pl.BlockSpec((nb, Kp), lambda n, c: (n, 0)),     # lane-dense out
            scratch_shapes=[pltpu.VMEM((nb, Kp), jnp.float32)],        # f32 logits acc
        ),
        compiler_params=pltpu.CompilerParams(
            dimension_semantics=("parallel", "arbitrary"),
            vmem_limit_bytes=int(vmem_limit),
        ),
        cost_estimate=cost,
    )(x_ncs, w_t, b2d)

    return out[:, :num_classes]


def reference_forward(x, weight, bias):
    if x.ndim == 4:
        x = x[:, :, None, :, :]
    pooled = jnp.mean(x, axis=(2, 3, 4))       # AvgPool3d over full volume -> (N, C)
    return pooled @ weight.T + bias


if __name__ == "__main__":
    key = jax.random.PRNGKey(0)
    k1, k2, k3, k4, k5, k6 = jax.random.split(key, 6)

    # --- test 1: 4-D input path (temporal dim unsqueezed), nonzero bias ------
    batch, in_ch, t, sp, ncls = 2, 32, 1, 7, 16
    x1 = jax.random.normal(k1, (batch, in_ch, sp, sp), dtype=jnp.float32)
    w1 = 0.01 * jax.random.normal(k2, (ncls, in_ch), dtype=jnp.float32)
    b1 = 0.1 * jax.random.normal(k3, (ncls,), dtype=jnp.float32)
    out1 = cls_head_forward(x1, w1, b1, in_channels=in_ch,
                            temporal_feature_size=t, spatial_feature_size=sp,
                            with_avg_pool=True)
    out1 = jax.block_until_ready(out1)
    ref1 = reference_forward(x1, w1, b1)
    assert out1.shape == (batch, ncls)
    assert jnp.allclose(out1, ref1, atol=1e-5, rtol=1e-5), "test1 mismatch"

    # --- test 2: 5-D input, T>1, forced channel chunking (multi-step grid) ---
    batch, in_ch, t, sp, ncls = 3, 64, 2, 7, 24
    x2 = jax.random.normal(k4, (batch, in_ch, t, sp, sp), dtype=jnp.float32)
    w2 = 0.01 * jax.random.normal(k5, (ncls, in_ch), dtype=jnp.float32)
    b2 = 0.1 * jax.random.normal(k6, (ncls,), dtype=jnp.float32)
    out2 = cls_head_forward(x2, w2, b2, in_channels=in_ch,
                            temporal_feature_size=t, spatial_feature_size=sp,
                            with_avg_pool=True,
                            target_block_bytes=16 * 1024)   # force c_blk < C
    out2 = jax.block_until_ready(out2)
    ref2 = reference_forward(x2, w2, b2)
    assert out2.shape == (batch, ncls)
    assert jnp.allclose(out2, ref2, atol=1e-5, rtol=1e-5), "test2 mismatch"

    print("KERNEL_OK")
</pallas_src>

<mosaic_0001>
module attributes {stable_mosaic.version = 11 : i64} {
  func.func @kernel(%arg0: i32, %arg1: i32, %arg2: memref<2x32x49xf32, #tpu.memory_space<vmem>>, %arg3: memref<32x128xf32, #tpu.memory_space<vmem>>, %arg4: memref<1x128xf32, #tpu.memory_space<vmem>>, %arg5: memref<2x128xf32, #tpu.memory_space<vmem>>, %arg6: memref<2x128xf32, #tpu.memory_space<vmem>>) attributes {dimension_semantics = [#tpu.dimension_semantics<parallel>, #tpu.dimension_semantics<arbitrary>], iteration_bounds = array<i64: 1, 1>, scalar_prefetch = 0 : i64, scratch_operands = 1 : i64, tpu.core_type = #tpu.core_type<tc>, window_params = [{transform_indices = @transform_0, window_bounds = array<i64: 2, 32, 49>}, {transform_indices = @transform_1, window_bounds = array<i64: 32, 128>}, {pipeline_mode = #tpu.pipeline_mode<synchronous>, transform_indices = @transform_2, window_bounds = array<i64: 1, 128>}, {transform_indices = @transform_3, window_bounds = array<i64: 2, 128>}]} {
    %c0_i32 = arith.constant 0 : i32
    %0 = arith.cmpi eq, %arg1, %c0_i32 : i32
    %1 = arith.extui %0 : i1 to i32
    %c0_i32_0 = arith.constant 0 : i32
    %2 = arith.cmpi ne, %1, %c0_i32_0 : i32
    scf.if %2 {
      %cst_12 = arith.constant 0.000000e+00 : f32
      %13 = vector.broadcast %cst_12 : f32 to vector<2x128xf32>
      %c0_13 = arith.constant 0 : index
      %c0_14 = arith.constant 0 : index
      %14 = vector.load %arg6[%c0_13, %c0_14] : memref<2x128xf32, #tpu.memory_space<vmem>>, vector<2x128xf32>
      tpu.vector_store %arg6[%c0_13, %c0_14], %13 {strides = array<i32>} : memref<2x128xf32, #tpu.memory_space<vmem>>, vector<2x128xf32>,
    } else {
    }
    %c0 = arith.constant 0 : index
    %c0_1 = arith.constant 0 : index
    %c0_2 = arith.constant 0 : index
    %3 = vector.load %arg2[%c0, %c0_1, %c0_2] : memref<2x32x49xf32, #tpu.memory_space<vmem>>, vector<2x32x49xf32>
    %cst = arith.constant dense<0.000000e+00> : vector<2x32xf32>
    %4 = vector.multi_reduction <add>, %3, %cst [2] : vector<2x32x49xf32> to vector<2x32xf32>
    %c0_3 = arith.constant 0 : index
    %c0_4 = arith.constant 0 : index
    %5 = vector.load %arg6[%c0_3, %c0_4] : memref<2x128xf32, #tpu.memory_space<vmem>>, vector<2x128xf32>
    %c0_5 = arith.constant 0 : index
    %c0_6 = arith.constant 0 : index
    %6 = vector.load %arg3[%c0_5, %c0_6] : memref<32x128xf32, #tpu.memory_space<vmem>>, vector<32x128xf32>
    %cst_7 = arith.constant dense<0.000000e+00> : vector<2x128xf32>
    %7 = tpu.matmul %4, %6, %cst_7 {dimension_numbers = #tpu.dot_dimension_numbers<[1], [0], [0], [1], [0, 0, 1, 1], [], []>} : vector<2x32xf32>, vector<32x128xf32>, vector<2x128xf32> -> vector<2x128xf32>
    %8 = arith.addf %5, %7 : vector<2x128xf32>
    %c0_8 = arith.constant 0 : index
    %c0_9 = arith.constant 0 : index
    %9 = vector.load %arg6[%c0_8, %c0_9] : memref<2x128xf32, #tpu.memory_space<vmem>>, vector<2x128xf32>
    tpu.vector_store %arg6[%c0_8, %c0_9], %8 {strides = array<i32>} : memref<2x128xf32, #tpu.memory_space<vmem>>, vector<2x128xf32>,
    %c0_i32_10 = arith.constant 0 : i32
    %10 = arith.cmpi eq, %arg1, %c0_i32_10 : i32
    %11 = arith.extui %10 : i1 to i32
    %c0_i32_11 = arith.constant 0 : i32
    %12 = arith.cmpi ne, %11, %c0_i32_11 : i32
    scf.if %12 {
      %c0_12 = arith.constant 0 : index
      %c0_13 = arith.constant 0 : index
      %13 = vector.load %arg6[%c0_12, %c0_13] : memref<2x128xf32, #tpu.memory_space<vmem>>, vector<2x128xf32>
      %cst_14 = arith.constant 0.0204081628 : f32
      %14 = vector.broadcast %cst_14 : f32 to vector<2x128xf32>
      %15 = arith.mulf %13, %14 : vector<2x128xf32>
      %c0_15 = arith.constant 0 : index
      %c0_16 = arith.constant 0 : index
      %16 = vector.load %arg4[%c0_15, %c0_16] : memref<1x128xf32, #tpu.memory_space<vmem>>, vector<1x128xf32>
      %17 = vector.broadcast %16 : vector<1x128xf32> to vector<2x128xf32>
      %18 = arith.addf %15, %17 : vector<2x128xf32>
      %c0_17 = arith.constant 0 : index
      %c0_18 = arith.constant 0 : index
      %19 = vector.load %arg5[%c0_17, %c0_18] : memref<2x128xf32, #tpu.memory_space<vmem>>, vector<2x128xf32>
      tpu.vector_store %arg5[%c0_17, %c0_18], %18 {strides = array<i32>} : memref<2x128xf32, #tpu.memory_space<vmem>>, vector<2x128xf32>,
    } else {
    }
    return
  }
  func.func @transform_0(%arg0: i32, %arg1: i32) -> (i32, i32, i32) {
    %c0_i32 = arith.constant 0 : i32
    %c0_i32_0 = arith.constant 0 : i32
    return %arg0, %arg1, %c0_i32 : i32, i32, i32
  }
  func.func @transform_1(%arg0: i32, %arg1: i32) -> (i32, i32) {
    %c0_i32 = arith.constant 0 : i32
    %c0_i32_0 = arith.constant 0 : i32
    return %arg1, %c0_i32 : i32, i32
  }
  func.func @transform_2(%arg0: i32, %arg1: i32) -> (i32, i32) {
    %c0_i32 = arith.constant 0 : i32
    %c0_i32_0 = arith.constant 0 : i32
    %c0_i32_1 = arith.constant 0 : i32
    return %c0_i32, %c0_i32_0 : i32, i32
  }
  func.func @transform_3(%arg0: i32, %arg1: i32) -> (i32, i32) {
    %c0_i32 = arith.constant 0 : i32
    %c0_i32_0 = arith.constant 0 : i32
    return %arg0, %c0_i32 : i32, i32
  }
}

</mosaic_0001>

<llo_original>
// kernel: tpu_custom_call.1
$region0: #{tpu_custom_call.1}
  #allocation0 [shape = 'u32[]', space=smem, size = 0x4, offset = 0x4, fixed_abs, tag = 'smem constant byte address 0x4 - core index']
  #allocation1 [shape = 'u32[144,128]{1,0:T(1,128)}', space=vmem, size = 0x12000, scoped, tag = 'internal scratch']
  #allocation2 [shape = 'f32[2,128]{1,0:T(2,128)}', space=vmem, size = 0x400, scoped, tag = 'scratch operand']
  %s0 = inlined_call_operand.hbm [shape: f32[2,32,49], index: 0, kind: input, shape index: {}]
  %s1 = inlined_call_operand.hbm [shape: f32[32,128], index: 1, kind: input, shape index: {}]
  %s2 = inlined_call_operand.vmem [shape: f32[1,128], index: 2, kind: input, shape index: {}]
  %s3 = inlined_call_operand.hbm [shape: f32[2,128], index: 3, kind: output, shape index: {}]
  %s4 = sld [smem:[#allocation0]]
  $region38: #{tpu_custom_call.1} parent=0
    _
  %s6 = ssub.s32 1, %s4
  %s7 = scalar_select 0, %s6, %s4
  $region1: #{tpu_custom_call.1} parent=0
    #allocation3 [shape = 'u8[32768]{0}', space=vmem, size = 0x8000, scoped, tag = 'input window, operand 0, single buffered']
    #allocation4 [shape = 's32[1]{0}', space=sflag, size = 0x4, scoped, tag = 'scoped memory for tpu_custom_call.1']
    #allocation5 [shape = 's32[1]{0}', space=sflag, size = 0x4, scoped, tag = 'scoped memory for tpu_custom_call.1']
    #allocation6 [shape = 'u8[16384]{0}', space=vmem, size = 0x4000, scoped, tag = 'input window, operand 1, single buffered']
    #allocation7 [shape = 's32[1]{0}', space=sflag, size = 0x4, scoped, tag = 'scoped memory for tpu_custom_call.1']
    #allocation8 [shape = 'u8[1024]{0}', space=vmem, size = 0x400, scoped, tag = 'output window, operand 0, single buffered']
    %8 = vsyncpa [#allocation4], 0
    %9 = vsyncpa [#allocation7], 0
    %10 = vsyncpa [#allocation5], 0
    // Predicated region
    $region2: #{tpu_custom_call.1} parent=1 // pred_check
      _
    $region3: #{tpu_custom_call.1} parent=1 // pred_check_branch
      %12 = sbr.rel (0) target = $region5
    $region4: #{tpu_custom_call.1} parent=1 // pred_region
      %s14 = ssub.s32 1024, 1024
      %15 = vsyncadd [#allocation4], %s14
      %s16 = sshll.u32 [#allocation3], 4
      %s17 = int_to_ptr.vmem [resolvable:$true] %s16
      %22 = dma.hbm_to_vmem [thread:$0]  %s0, 1024, %s17, [#allocation4], 128, 128, 8
    $region5: #{tpu_custom_call.1} parent=1 // pred_fallthru
      _
    // Predicated region
    $region6: #{tpu_custom_call.1} parent=1 // pred_check
      _
    $region7: #{tpu_custom_call.1} parent=1 // pred_check_branch
      %24 = sbr.rel (0) target = $region9
    $region8: #{tpu_custom_call.1} parent=1 // pred_region
      %s26 = ssub.s32 512, 512
      %27 = vsyncadd [#allocation7], %s26
      %s28 = sshll.u32 [#allocation6], 4
      %s29 = int_to_ptr.vmem [resolvable:$true] %s28
      %34 = dma.hbm_to_vmem [thread:$0]  %s1, 512, %s29, [#allocation7], 128, 128, 8
    $region9: #{tpu_custom_call.1} parent=1 // pred_fallthru
      _
    // Predicated region
    $region10: #{tpu_custom_call.1} parent=1 // pred_check
      _
    $region11: #{tpu_custom_call.1} parent=1 // pred_check_branch
      %36 = sbr.rel (0) target = $region13
    $region12: #{tpu_custom_call.1} parent=1 // pred_region
      _
    $region13: #{tpu_custom_call.1} parent=1 // pred_fallthru
      _
    // Predicated region
    $region14: #{tpu_custom_call.1} parent=1 // pred_check
      _
    $region15: #{tpu_custom_call.1} parent=1 // pred_check_branch
      %38 = sbr.rel (0) target = $region17
    $region16: #{tpu_custom_call.1} parent=1 // pred_region
      %39 = dma.done [#allocation4], 1024
    $region17: #{tpu_custom_call.1} parent=1 // pred_fallthru
      _
    // Predicated region
    $region18: #{tpu_custom_call.1} parent=1 // pred_check
      _
    $region19: #{tpu_custom_call.1} parent=1 // pred_check_branch
      %41 = sbr.rel (0) target = $region21
    $region20: #{tpu_custom_call.1} parent=1 // pred_region
      %42 = dma.done [#allocation7], 512
    $region21: #{tpu_custom_call.1} parent=1 // pred_fallthru
      _
    %p43 = scmp.eq.s32.totalorder 0, 0
    // Predicated region
    $region22: #{tpu_custom_call.1} parent=1 // pred_check
      %p44 = pneg %p43
    $region23: #{tpu_custom_call.1} parent=1 // pred_check_branch
      %46 = sbr.rel (%p44) target = $region25
    $region24: #{tpu_custom_call.1} parent=1 // pred_region
      %47 = vst [vmem:[#allocation2] sm:$0x3] 0.0
    $region25: #{tpu_custom_call.1} parent=1 // pred_fallthru
      _
    %v48 = vld [vmem:[#allocation3] sm:$0xff]
    %v49 = vld [vmem:[#allocation3 + $0x8] sm:$0xff]
    %v50 = vld [vmem:[#allocation3 + $0x10] sm:$0xff]
    %v51 = vld [vmem:[#allocation3 + $0x18] sm:$0xff]
    %v52 = vld [vmem:[#allocation3 + $0x20] sm:$0xff]
    %v53 = vld [vmem:[#allocation3 + $0x28] sm:$0xff]
    %v54 = vld [vmem:[#allocation3 + $0x30] sm:$0xff]
    %v55 = vld [vmem:[#allocation3 + $0x38] sm:$0xff]
    %vm56 = vcmask 400384
    %v57 = vsel %vm56, %v48, 0.0
    %58 = vadd.xlane.f32.xlu0 %v57
    %v59 = vpop.xlane.xlu0 %58
    %v60 = vsel %vm56, %v49, 0.0
    %61 = vadd.xlane.f32.xlu0 %v60
    %v62 = vpop.xlane.xlu0 %61
    %v63 = vsel %vm56, %v50, 0.0
    %64 = vadd.xlane.f32.xlu0 %v63
    %v65 = vpop.xlane.xlu0 %64
    %v66 = vsel %vm56, %v51, 0.0
    %67 = vadd.xlane.f32.xlu0 %v66
    %v68 = vpop.xlane.xlu0 %67
    %v69 = vsel %vm56, %v52, 0.0
    %70 = vadd.xlane.f32.xlu0 %v69
    %v71 = vpop.xlane.xlu0 %70
    %v72 = vsel %vm56, %v53, 0.0
    %73 = vadd.xlane.f32.xlu0 %v72
    %v74 = vpop.xlane.xlu0 %73
    %v75 = vsel %vm56, %v54, 0.0
    %76 = vadd.xlane.f32.xlu0 %v75
    %v77 = vpop.xlane.xlu0 %76
    %v78 = vsel %vm56, %v55, 0.0
    %79 = vadd.xlane.f32.xlu0 %v78
    %v80 = vpop.xlane.xlu0 %79
    %v81 = vld [vmem:[#allocation2] sm:$0x3]
    %v82 = vld [vmem:[#allocation6] sm:$0xff]
    %v83 = vld [vmem:[#allocation6 + $0x8] sm:$0xff]
    %v84 = vld [vmem:[#allocation6 + $0x10] sm:$0xff]
    %v85 = vld [vmem:[#allocation6 + $0x18] sm:$0xff]
    %v94 = vlaneseq
    %v95 = vand.u32 %v94, 127
    %v96 = vlaneseq
    %v97 = vshrl.u32 %v96, 7
    %v98 = vsub.s32 %v95, %v97
    %v99 = vrot.slane %v59, %v98
    %v100 = vadd.s32 %v95, 4294967288
    %v101 = vlaneseq
    %v102 = vshrl.u32 %v101, 7
    %v103 = vsub.s32 %v100, %v102
    %v104 = vrot.slane %v62, %v103
    %vm105 = vcmask 130112
    %v106 = vsel %vm105, %v104, %v99
    %v107 = vadd.s32 %v95, 4294967280
    %v108 = vlaneseq
    %v109 = vshrl.u32 %v108, 7
    %v110 = vsub.s32 %v107, %v109
    %v111 = vrot.slane %v65, %v110
    %vm112 = vcmask 195712
    %v113 = vsel %vm112, %v111, %v106
    %v114 = vadd.s32 %v95, 4294967272
    %v115 = vlaneseq
    %v116 = vshrl.u32 %v115, 7
    %v117 = vsub.s32 %v114, %v116
    %v118 = vrot.slane %v68, %v117
    %vm119 = vcmask 261312
    %v120 = vsel %vm119, %v118, %v113
    %v121 = vlaneseq
    %v122 = vshrl.u32 %v121, 7
    %v123 = vsub.s32 %v95, %v122
    %v124 = vrot.slane %v71, %v123
    %v125 = vlaneseq
    %v126 = vshrl.u32 %v125, 7
    %v127 = vsub.s32 %v100, %v126
    %v128 = vrot.slane %v74, %v127
    %v129 = vsel %vm105, %v128, %v124
    %v130 = vlaneseq
    %v131 = vshrl.u32 %v130, 7
    %v132 = vsub.s32 %v107, %v131
    %v133 = vrot.slane %v77, %v132
    %v134 = vsel %vm112, %v133, %v129
    %v135 = vlaneseq
    %v136 = vshrl.u32 %v135, 7
    %v137 = vsub.s32 %v114, %v136
    %v138 = vrot.slane %v80, %v137
    %v139 = vsel %vm119, %v138, %v134
    %vm140 = vcmask 1041409
    %v141 = vsel %vm140, %v139, %v120
    %vm142 = vcmask 261120
    %v143 = vsel %vm142, %v141, 0
    %145 = vmatprep.subr.mxu0 0.0
    %146 = vmatpush1.msra.mxu0 0.0
    %147 = vmatprep.subr.mxu0 0.0
    %148 = vmatpush1.msra.mxu0 0.0
    %149 = vmatprep.subr.mxu0 0.0
    %150 = vmatpush1.msra.mxu0 0.0
    %151 = vmatprep.subr.mxu0 0.0
    %152 = vmatpush1.msra.mxu0 0.0
    %153 = vmatprep.subr.mxu0 0.0
    %154 = vmatpush1.msra.mxu0 0.0
    %155 = vmatprep.subr.mxu0 0.0
    %156 = vmatpush1.msra.mxu0 0.0
    %157 = vmatprep.subr.mxu0 0.0
    %158 = vmatpush1.msra.mxu0 0.0
    %159 = vmatprep.subr.mxu0 0.0
    %160 = vmatpush1.msra.mxu0 0.0
    %161 = vmatprep.subr.mxu0 0.0
    %162 = vmatpush1.msra.mxu0 0.0
    %163 = vmatprep.subr.mxu0 0.0
    %164 = vmatpush1.msra.mxu0 0.0
    %165 = vmatprep.subr.mxu0 0.0
    %166 = vmatpush1.msra.mxu0 0.0
    %167 = vmatprep.subr.mxu0 0.0
    %168 = vmatpush1.msra.mxu0 0.0
    %169 = vmatprep.subr.mxu0 0.0
    %170 = vmatpush1.msra.mxu0 %v85
    %171 = vmatprep.subr.mxu0 0.0
    %172 = vmatpush1.msra.mxu0 %v84
    %173 = vmatprep.subr.mxu0 0.0
    %174 = vmatpush1.msra.mxu0 %v83
    %175 = vmatprep.subr.mxu0 0.0
    %176 = vmatpush1.msra.mxu0 %v82
    %177 = vmatprep.subr.mxu0 0.0
    %178 = vmatpush2.msra.mxu0 0.0
    %179 = vmatprep.subr.mxu0 0.0
    %180 = vmatpush2.msra.mxu0 0.0
    %181 = vmatprep.subr.mxu0 0.0
    %182 = vmatpush2.msra.mxu0 0.0
    %183 = vmatprep.subr.mxu0 0.0
    %184 = vmatpush2.msra.mxu0 0.0
    %185 = vmatprep.subr.mxu0 0.0
    %186 = vmatpush2.msra.mxu0 0.0
    %187 = vmatprep.subr.mxu0 0.0
    %188 = vmatpush2.msra.mxu0 0.0
    %189 = vmatprep.subr.mxu0 0.0
    %190 = vmatpush2.msra.mxu0 0.0
    %191 = vmatprep.subr.mxu0 0.0
    %192 = vmatpush2.msra.mxu0 0.0
    %193 = vmatprep.subr.mxu0 0.0
    %194 = vmatpush2.msra.mxu0 0.0
    %195 = vmatprep.subr.mxu0 0.0
    %196 = vmatpush2.msra.mxu0 0.0
    %197 = vmatprep.subr.mxu0 0.0
    %198 = vmatpush2.msra.mxu0 0.0
    %199 = vmatprep.subr.mxu0 0.0
    %200 = vmatpush2.msra.mxu0 0.0
    %201 = vmatprep.subr.mxu0 0.0
    %202 = vmatpush2.msra.mxu0 0.0
    %203 = vmatprep.subr.mxu0 0.0
    %204 = vmatpush2.msra.mxu0 0.0
    %205 = vmatprep.subr.mxu0 0.0
    %206 = vmatpush2.msra.mxu0 0.0
    %207 = vmatprep.subr.mxu0 0.0
    %208 = vmatpush2.msra.mxu0 0.0
    %209 = vmatprep.mubr.f32.mxu0 0.0
    %210 = vmatmul.mubr.f32.gmra.mxu0 %v143
    %v211 = vpop.f32.mrf.mxu0
    %v212 = vadd.f32 0.0, %v211
    %v213 = vpop.f32.mrf.mxu0
    %214 = vdwg.mxu0
    %v215 = vadd.f32 %v81, %v212
    %216 = vst [vmem:[#allocation2] sm:$0x3] %v215
    // Predicated region
    $region26: #{tpu_custom_call.1} parent=1 // pred_check
      %p217 = pneg %p43
    $region27: #{tpu_custom_call.1} parent=1 // pred_check_branch
      %219 = sbr.rel (%p217) target = $region29
    $region28: #{tpu_custom_call.1} parent=1 // pred_region
      %v220 = vld [vmem:[#allocation2] sm:$0x3]
      %v221 = vmul.f32 %v220, 0.020408163
      %v222 = vld [vmem:[%s2] sm:$0x1]
      %v224 = vlaneseq
      %v225 = vshrl.u32 %v224, 7
      %v226 = vsub.s32 0, %v225
      %v227 = vrot.slane %v222, %v226
      %v229 = vadd.f32 %v221, %v227
      %230 = vst [vmem:[#allocation8] sm:$0x3] %v229
    $region29: #{tpu_custom_call.1} parent=1 // pred_fallthru
      _
    // Predicated region
    $region30: #{tpu_custom_call.1} parent=1 // pred_check
      _
    $region31: #{tpu_custom_call.1} parent=1 // pred_check_branch
      %232 = sbr.rel (0) target = $region33
    $region32: #{tpu_custom_call.1} parent=1 // pred_region
      %s234 = ssub.s32 32, 32
      %235 = vsyncadd [#allocation5], %s234
      %s237 = sshll.u32 [#allocation8], 4
      %s238 = int_to_ptr.vmem [resolvable:$true] %s237
      %240 = dma.vmem_to_hbm [thread:$0]  %s238, 32, %s3, [#allocation5]
    $region33: #{tpu_custom_call.1} parent=1 // pred_fallthru
      _
    // Predicated region
    $region34: #{tpu_custom_call.1} parent=1 // pred_check
      _
    $region35: #{tpu_custom_call.1} parent=1 // pred_check_branch
      %242 = sbr.rel (0) target = $region37
    $region36: #{tpu_custom_call.1} parent=1 // pred_region
      %243 = dma.done [#allocation5], 32
    $region37: #{tpu_custom_call.1} parent=1 // pred_fallthru
      _
    %244 = vsyncpa [#allocation4], 1
    %245 = vsyncpa [#allocation7], 1
    %246 = vsyncpa [#allocation5], 1

</llo_original>
